<compile_context>
chip_gen: v7x
topology: tpu7x:2x2x1
jax: 0.10.0
libtpu: 0.0.40
codegen_flags: <defaults>
</compile_context>

<pallas_src>
import functools
import math

import jax
import jax.numpy as jnp
from jax import lax
from jax.experimental import pallas as pl
from jax.experimental.pallas import tpu as pltpu


def mcfa_kernel(x_ref, w_ref, b_ref, o_ref, *, wp, inv_hw, cout, nb):
    """One grid step == NB batch elements.

    x_ref : (NB, Cin, Lext)   bf16, zero-padded image flattened over (H+3, Wp)
    w_ref : (3*Cout, 9*Cin)   bf16 fused weights, K ordered tap-major (k*Cin + c):
                                rows [0, Cout)          BN-folded 3x3 taps
                                rows [Cout, 2*Cout)     BN-folded 1x1 (center tap only)
                                rows [2*Cout, 3*Cout)   attention 1x1 (center tap only)
    b_ref : (3*Cout, 1)       f32  [b3_folded ; b1_folded ; ba]
    o_ref : (NB, Cout, Lout)  Lout = H*Wp (multiple of 128); pad columns cropped by wrapper
    """
    lout = o_ref.shape[2]

    w = w_ref[...]                                        # hoisted single weight load
    b = b_ref[...]
    b3 = b[:cout]
    b1 = b[cout:2 * cout]
    bg = b[2 * cout:]

    # im2col: nine static lane-offset slices of each slab, stacked once on the sublane
    # axis; the NB images are merged onto the lane axis -> one fat MXU contraction.
    cols = []
    for bi in range(nb):
        x = x_ref[bi]                                     # (Cin, Lext) bf16
        taps = [x[:, ky * wp + kx: ky * wp + kx + lout]   # (Cin, Lout) per tap
                for ky in range(3) for kx in range(3)]
        cols.append(jnp.concatenate(taps, axis=0))        # (9*Cin, Lout)
    im = cols[0] if nb == 1 else jnp.concatenate(cols, axis=1)   # (9*Cin, NB*Lout)

    # Single fused 3x3 + 1x1 + gate matmul, f32 accumulation on the MXU.
    acc = jnp.dot(w, im, preferred_element_type=jnp.float32)     # (3*Cout, NB*Lout)

    for bi in range(nb):
        a = acc[:, bi * lout:(bi + 1) * lout]             # lane-aligned static slice
        x2 = a[:cout] + b3                                # 3x3 branch   (Cout, Lout)
        x1 = a[cout:2 * cout] + b1                        # 1x1 branch   (Cout, Lout)
        # Attention gate folded into the matmul: pad-column center-tap inputs are
        # exactly zero, so the full-lane sum equals the sum of (wa @ x) over the
        # H*W valid pixels.
        glog = jnp.sum(a[2 * cout:], axis=1, keepdims=True) * inv_hw + bg
        gate = jax.nn.sigmoid(glog)                       # (Cout, 1) f32
        z = x2 + gate * x1
        o_ref[bi] = (z * jax.nn.sigmoid(z)).astype(o_ref.dtype)   # SiLU, lane-dense store


def fold_bn(w_oihw, b, gamma, beta, mean, var, eps=1e-5):
    """Fold eval-mode BatchNorm2d into a conv's weight (OIHW) and bias."""
    s = gamma / jnp.sqrt(var + eps)                       # (Cout,)
    return w_oihw * s[:, None, None, None], (b - mean) * s + beta


def pack_mcfa_params(p, eps=1e-5):
    """Fold BN and pack all three convs into one fused weight/bias (runs once)."""
    w1f, b1f = fold_bn(p["w1"], p["b1"], p["g1"], p["be1"], p["m1"], p["v1"], eps)
    w3f, b3f = fold_bn(p["w3"], p["b3"], p["g3"], p["be3"], p["m3"], p["v3"], eps)
    cout, cin = w1f.shape[0], w1f.shape[1]
    # 3x3 taps: (Cout, Cin, ky, kx) -> (Cout, ky, kx, Cin) -> (Cout, 9*Cin),
    # K ordered tap-major (k = ky*3 + kx, channel-minor) to match the im2col.
    w3k = jnp.transpose(w3f, (0, 2, 3, 1)).reshape(cout, 9 * cin)
    w_all = jnp.zeros((3 * cout, 9 * cin), jnp.float32)
    w_all = w_all.at[:cout, :].set(w3k)
    w_all = w_all.at[cout:2 * cout, 4 * cin:5 * cin].set(w1f[:, :, 0, 0])   # 1x1, center tap
    w_all = w_all.at[2 * cout:, 4 * cin:5 * cin].set(p["wa"][:, :, 0, 0])   # gate, center tap
    w_all = w_all.astype(jnp.bfloat16)                    # bf16 MXU operands
    b_all = jnp.concatenate([b3f, b1f, p["ba"]]).reshape(3 * cout, 1).astype(jnp.float32)
    return w_all, b_all


def _pick_nb(n):
    """Images per grid step: amortize the fixed per-step cost while keeping >= 2
    grid steps when possible (batch axis shards across both v7x TensorCores)."""
    target = max(1, n // 2)
    for nb in range(min(8, target), 0, -1):
        if n % nb == 0:
            return nb
    return 1


@functools.partial(jax.jit, static_argnames=("out_dtype",))
def mcfa_forward(x_nchw, w_all, b_all, out_dtype=jnp.bfloat16):
    n, cin, h, w = x_nchw.shape
    cout = w_all.shape[0] // 3

    # Lane-dense output: round the padded width up so Lout = H*Wp is a multiple of
    # 128 (unmasked vst); the extra columns are zero padding, cropped below.
    g = 128 // math.gcd(h, 128)
    wp = pl.cdiv(w + 2, g) * g                            # >= w + 2, H*wp % 128 == 0
    lout = h * wp
    lext = (h + 3) * wp
    nb = _pick_nb(n)

    # Single pad (rows (1, 2) so every tap's lane slice stays in bounds, cols
    # (1, wp-w-1)) + flatten + bf16 cast: one pre-kernel pass over the activation.
    xp = jnp.pad(x_nchw, ((0, 0), (0, 0), (1, 2), (1, wp - w - 1)))
    xe = xp.reshape(n, cin, lext).astype(jnp.bfloat16)

    out_flat = pl.pallas_call(
        functools.partial(mcfa_kernel, wp=wp, inv_hw=1.0 / (h * w), cout=cout, nb=nb),
        out_shape=jax.ShapeDtypeStruct((n, cout, lout), out_dtype),
        grid_spec=pltpu.PrefetchScalarGridSpec(
            num_scalar_prefetch=0,
            grid=(n // nb,),
            in_specs=[
                pl.BlockSpec((nb, cin, lext), lambda i: (i, 0, 0)),
                pl.BlockSpec((3 * cout, 9 * cin), lambda i: (0, 0)),
                pl.BlockSpec((3 * cout, 1), lambda i: (0, 0)),
            ],
            out_specs=pl.BlockSpec((nb, cout, lout), lambda i: (i, 0, 0)),
        ),
        compiler_params=pltpu.CompilerParams(
            dimension_semantics=("parallel",),
            # Per-step footprint is a few hundred KB at these shapes; 32 MiB also
            # fits comfortably inside v7x's 64 MiB physical VMEM.
            vmem_limit_bytes=32 * 1024 * 1024,
        ),
    )(xe, w_all, b_all)

    # (N, Cout, H*Wp) -> (N, Cout, H, Wp) -> crop the pad columns.
    return out_flat.reshape(n, cout, h, wp)[:, :, :, :w]


def reference_forward(x_nchw, p):
    """Independent pure-JAX f32 reference in the original NCHW layout."""
    dn = ("NCHW", "OIHW", "NCHW")

    def conv(x, w, b, pad):
        y = lax.conv_general_dilated(x, w, window_strides=(1, 1),
                                     padding=[(pad, pad), (pad, pad)],
                                     dimension_numbers=dn)
        return y + b[None, :, None, None]

    def bn(x, gamma, beta, mean, var, eps=1e-5):
        s = gamma / jnp.sqrt(var + eps)
        return x * s[None, :, None, None] + (beta - mean * s)[None, :, None, None]

    x1 = bn(conv(x_nchw, p["w1"], p["b1"], 0),
            p["g1"], p["be1"], p["m1"], p["v1"])
    x2 = bn(conv(x_nchw, p["w3"], p["b3"], 1),
            p["g3"], p["be3"], p["m3"], p["v3"])
    pooled = jnp.mean(x_nchw, axis=(2, 3), keepdims=True)     # (N, Cin, 1, 1)
    gate = jax.nn.sigmoid(conv(pooled, p["wa"], p["ba"], 0))  # (N, Cout, 1, 1)
    z = x2 + gate * x1
    return z * jax.nn.sigmoid(z)


if __name__ == "__main__":
    # N = 4 exercises both the NB=2 per-step batching and a 2-step "parallel" grid.
    N, Cin, Cout, H, W = 4, 4, 8, 16, 16

    key = jax.random.PRNGKey(0)
    ks = jax.random.split(key, 16)
    p = {
        # conv weights in PyTorch layout (Cout, Cin, kh, kw)
        "w1": 0.2 * jax.random.normal(ks[0], (Cout, Cin, 1, 1), jnp.float32),
        "b1": 0.1 * jax.random.normal(ks[1], (Cout,), jnp.float32),
        "w3": 0.2 * jax.random.normal(ks[2], (Cout, Cin, 3, 3), jnp.float32),
        "b3": 0.1 * jax.random.normal(ks[3], (Cout,), jnp.float32),
        "wa": 0.2 * jax.random.normal(ks[4], (Cout, Cin, 1, 1), jnp.float32),
        "ba": 0.1 * jax.random.normal(ks[5], (Cout,), jnp.float32),
        # BatchNorm params (eval mode)
        "g1": 1.0 + 0.1 * jax.random.normal(ks[6], (Cout,), jnp.float32),
        "be1": 0.1 * jax.random.normal(ks[7], (Cout,), jnp.float32),
        "m1": 0.1 * jax.random.normal(ks[8], (Cout,), jnp.float32),
        "v1": jnp.abs(jax.random.normal(ks[9], (Cout,), jnp.float32)) + 0.5,
        "g3": 1.0 + 0.1 * jax.random.normal(ks[10], (Cout,), jnp.float32),
        "be3": 0.1 * jax.random.normal(ks[11], (Cout,), jnp.float32),
        "m3": 0.1 * jax.random.normal(ks[12], (Cout,), jnp.float32),
        "v3": jnp.abs(jax.random.normal(ks[13], (Cout,), jnp.float32)) + 0.5,
    }

    x_nchw = jax.random.normal(ks[14], (N, Cin, H, W), jnp.float32)

    # --- fold BN, pack the fused weight/bias (glue, runs once) -----------------
    w_all, b_all = pack_mcfa_params(p)

    out = mcfa_forward(x_nchw, w_all, b_all)
    out = jax.block_until_ready(out)

    # --- verify against an independent f32 NCHW reference ----------------------
    ref = reference_forward(x_nchw, p)
    assert out.shape == (N, Cout, H, W)
    out32 = out.astype(jnp.float32)
    # bf16 MXU operands + bf16 output store -> loosened tolerance vs pure-f32 ref.
    assert jnp.allclose(out32, ref, rtol=4e-2, atol=4e-2), (
        float(jnp.max(jnp.abs(out32 - ref))))

    print("KERNEL_OK")
</pallas_src>

<mosaic_0001>
module attributes {stable_mosaic.version = 11 : i64} {
  func.func @mcfa_kernel(%arg0: i32, %arg1: memref<2x4x456xbf16, #tpu.memory_space<vmem>>, %arg2: memref<24x36xbf16, #tpu.memory_space<vmem>>, %arg3: memref<24x1xf32, #tpu.memory_space<vmem>>, %arg4: memref<2x8x384xbf16, #tpu.memory_space<vmem>>) attributes {dimension_semantics = [#tpu.dimension_semantics<parallel>], iteration_bounds = array<i64: 2>, scalar_prefetch = 0 : i64, scratch_operands = 0 : i64, tpu.core_type = #tpu.core_type<tc>, window_params = [{transform_indices = @transform_0, window_bounds = array<i64: 2, 4, 456>}, {pipeline_mode = #tpu.pipeline_mode<synchronous>, transform_indices = @transform_1, window_bounds = array<i64: 24, 36>}, {pipeline_mode = #tpu.pipeline_mode<synchronous>, transform_indices = @transform_2, window_bounds = array<i64: 24, 1>}, {transform_indices = @transform_3, window_bounds = array<i64: 2, 8, 384>}]} {
    %c0 = arith.constant 0 : index
    %c0_0 = arith.constant 0 : index
    %0 = vector.load %arg2[%c0, %c0_0] : memref<24x36xbf16, #tpu.memory_space<vmem>>, vector<24x36xbf16>
    %c0_1 = arith.constant 0 : index
    %c0_2 = arith.constant 0 : index
    %1 = vector.load %arg3[%c0_1, %c0_2] : memref<24x1xf32, #tpu.memory_space<vmem>>, vector<24x1xf32>
    %2 = vector.extract_strided_slice %1 {offsets = [0, 0], sizes = [8, 1], strides = [1, 1]} : vector<24x1xf32> to vector<8x1xf32>
    %3 = vector.extract_strided_slice %1 {offsets = [8, 0], sizes = [8, 1], strides = [1, 1]} : vector<24x1xf32> to vector<8x1xf32>
    %4 = vector.extract_strided_slice %1 {offsets = [16, 0], sizes = [8, 1], strides = [1, 1]} : vector<24x1xf32> to vector<8x1xf32>
    %c0_3 = arith.constant 0 : index
    %c0_4 = arith.constant 0 : index
    %c0_5 = arith.constant 0 : index
    %5 = vector.load %arg1[%c0_3, %c0_4, %c0_5] : memref<2x4x456xbf16, #tpu.memory_space<vmem>>, vector<1x4x456xbf16>
    %6 = vector.shape_cast %5 : vector<1x4x456xbf16> to vector<4x456xbf16>
    %7 = vector.extract_strided_slice %6 {offsets = [0, 0], sizes = [4, 384], strides = [1, 1]} : vector<4x456xbf16> to vector<4x384xbf16>
    %8 = vector.extract_strided_slice %6 {offsets = [0, 1], sizes = [4, 384], strides = [1, 1]} : vector<4x456xbf16> to vector<4x384xbf16>
    %9 = vector.extract_strided_slice %6 {offsets = [0, 2], sizes = [4, 384], strides = [1, 1]} : vector<4x456xbf16> to vector<4x384xbf16>
    %10 = vector.extract_strided_slice %6 {offsets = [0, 24], sizes = [4, 384], strides = [1, 1]} : vector<4x456xbf16> to vector<4x384xbf16>
    %11 = vector.extract_strided_slice %6 {offsets = [0, 25], sizes = [4, 384], strides = [1, 1]} : vector<4x456xbf16> to vector<4x384xbf16>
    %12 = vector.extract_strided_slice %6 {offsets = [0, 26], sizes = [4, 384], strides = [1, 1]} : vector<4x456xbf16> to vector<4x384xbf16>
    %13 = vector.extract_strided_slice %6 {offsets = [0, 48], sizes = [4, 384], strides = [1, 1]} : vector<4x456xbf16> to vector<4x384xbf16>
    %14 = vector.extract_strided_slice %6 {offsets = [0, 49], sizes = [4, 384], strides = [1, 1]} : vector<4x456xbf16> to vector<4x384xbf16>
    %15 = vector.extract_strided_slice %6 {offsets = [0, 50], sizes = [4, 384], strides = [1, 1]} : vector<4x456xbf16> to vector<4x384xbf16>
    %16 = tpu.concatenate %7, %8, %9, %10, %11, %12, %13, %14, %15 in 0 : vector<4x384xbf16>, vector<4x384xbf16>, vector<4x384xbf16>, vector<4x384xbf16>, vector<4x384xbf16>, vector<4x384xbf16>, vector<4x384xbf16>, vector<4x384xbf16>, vector<4x384xbf16> -> vector<36x384xbf16>
    %c1 = arith.constant 1 : index
    %c0_6 = arith.constant 0 : index
    %c0_7 = arith.constant 0 : index
    %17 = vector.load %arg1[%c1, %c0_6, %c0_7] : memref<2x4x456xbf16, #tpu.memory_space<vmem>>, vector<1x4x456xbf16>
    %18 = vector.shape_cast %17 : vector<1x4x456xbf16> to vector<4x456xbf16>
    %19 = vector.extract_strided_slice %18 {offsets = [0, 0], sizes = [4, 384], strides = [1, 1]} : vector<4x456xbf16> to vector<4x384xbf16>
    %20 = vector.extract_strided_slice %18 {offsets = [0, 1], sizes = [4, 384], strides = [1, 1]} : vector<4x456xbf16> to vector<4x384xbf16>
    %21 = vector.extract_strided_slice %18 {offsets = [0, 2], sizes = [4, 384], strides = [1, 1]} : vector<4x456xbf16> to vector<4x384xbf16>
    %22 = vector.extract_strided_slice %18 {offsets = [0, 24], sizes = [4, 384], strides = [1, 1]} : vector<4x456xbf16> to vector<4x384xbf16>
    %23 = vector.extract_strided_slice %18 {offsets = [0, 25], sizes = [4, 384], strides = [1, 1]} : vector<4x456xbf16> to vector<4x384xbf16>
    %24 = vector.extract_strided_slice %18 {offsets = [0, 26], sizes = [4, 384], strides = [1, 1]} : vector<4x456xbf16> to vector<4x384xbf16>
    %25 = vector.extract_strided_slice %18 {offsets = [0, 48], sizes = [4, 384], strides = [1, 1]} : vector<4x456xbf16> to vector<4x384xbf16>
    %26 = vector.extract_strided_slice %18 {offsets = [0, 49], sizes = [4, 384], strides = [1, 1]} : vector<4x456xbf16> to vector<4x384xbf16>
    %27 = vector.extract_strided_slice %18 {offsets = [0, 50], sizes = [4, 384], strides = [1, 1]} : vector<4x456xbf16> to vector<4x384xbf16>
    %28 = tpu.concatenate %19, %20, %21, %22, %23, %24, %25, %26, %27 in 0 : vector<4x384xbf16>, vector<4x384xbf16>, vector<4x384xbf16>, vector<4x384xbf16>, vector<4x384xbf16>, vector<4x384xbf16>, vector<4x384xbf16>, vector<4x384xbf16>, vector<4x384xbf16> -> vector<36x384xbf16>
    %29 = tpu.concatenate %16, %28 in 1 : vector<36x384xbf16>, vector<36x384xbf16> -> vector<36x768xbf16>
    %cst = arith.constant dense<0.000000e+00> : vector<24x768xf32>
    %30 = tpu.matmul %0, %29, %cst {dimension_numbers = #tpu.dot_dimension_numbers<[1], [0], [0], [1], [0, 0, 1, 1], [], []>} : vector<24x36xbf16>, vector<36x768xbf16>, vector<24x768xf32> -> vector<24x768xf32>
    %31 = vector.extract_strided_slice %30 {offsets = [0, 0], sizes = [24, 384], strides = [1, 1]} : vector<24x768xf32> to vector<24x384xf32>
    %32 = vector.extract_strided_slice %31 {offsets = [0, 0], sizes = [8, 384], strides = [1, 1]} : vector<24x384xf32> to vector<8x384xf32>
    %33 = vector.broadcast %2 : vector<8x1xf32> to vector<8x384xf32>
    %34 = arith.addf %32, %33 : vector<8x384xf32>
    %35 = vector.extract_strided_slice %31 {offsets = [8, 0], sizes = [8, 384], strides = [1, 1]} : vector<24x384xf32> to vector<8x384xf32>
    %36 = vector.broadcast %3 : vector<8x1xf32> to vector<8x384xf32>
    %37 = arith.addf %35, %36 : vector<8x384xf32>
    %38 = vector.extract_strided_slice %31 {offsets = [16, 0], sizes = [8, 384], strides = [1, 1]} : vector<24x384xf32> to vector<8x384xf32>
    %cst_8 = arith.constant dense<0.000000e+00> : vector<8xf32>
    %39 = vector.multi_reduction <add>, %38, %cst_8 [1] : vector<8x384xf32> to vector<8xf32>
    %40 = vector.shape_cast %39 : vector<8xf32> to vector<8x1xf32>
    %cst_9 = arith.constant 3.906250e-03 : f32
    %41 = vector.broadcast %cst_9 : f32 to vector<8x1xf32>
    %42 = arith.mulf %40, %41 : vector<8x1xf32>
    %43 = arith.addf %42, %4 : vector<8x1xf32>
    %44 = arith.negf %43 : vector<8x1xf32>
    %45 = math.exp %44 : vector<8x1xf32>
    %cst_10 = arith.constant 1.000000e+00 : f32
    %46 = vector.broadcast %cst_10 : f32 to vector<8x1xf32>
    %47 = arith.addf %46, %45 : vector<8x1xf32>
    %48 = arith.divf %46, %47 : vector<8x1xf32>
    %49 = vector.broadcast %48 : vector<8x1xf32> to vector<8x384xf32>
    %50 = arith.mulf %49, %37 : vector<8x384xf32>
    %51 = arith.addf %34, %50 : vector<8x384xf32>
    %52 = arith.negf %51 : vector<8x384xf32>
    %53 = math.exp %52 : vector<8x384xf32>
    %cst_11 = arith.constant 1.000000e+00 : f32
    %54 = vector.broadcast %cst_11 : f32 to vector<8x384xf32>
    %55 = arith.addf %54, %53 : vector<8x384xf32>
    %56 = arith.divf %54, %55 : vector<8x384xf32>
    %57 = arith.mulf %51, %56 : vector<8x384xf32>
    %58 = arith.truncf %57 : vector<8x384xf32> to vector<8x384xbf16>
    %c0_12 = arith.constant 0 : index
    %c0_13 = arith.constant 0 : index
    %c0_14 = arith.constant 0 : index
    %59 = vector.load %arg4[%c0_12, %c0_13, %c0_14] : memref<2x8x384xbf16, #tpu.memory_space<vmem>>, vector<1x8x384xbf16>
    %60 = vector.shape_cast %59 : vector<1x8x384xbf16> to vector<8x384xbf16>
    %61 = vector.shape_cast %58 : vector<8x384xbf16> to vector<1x8x384xbf16>
    tpu.vector_store %arg4[%c0_12, %c0_13, %c0_14], %61 {strides = array<i32>} : memref<2x8x384xbf16, #tpu.memory_space<vmem>>, vector<1x8x384xbf16>,
    %62 = vector.extract_strided_slice %30 {offsets = [0, 384], sizes = [24, 384], strides = [1, 1]} : vector<24x768xf32> to vector<24x384xf32>
    %63 = vector.extract_strided_slice %62 {offsets = [0, 0], sizes = [8, 384], strides = [1, 1]} : vector<24x384xf32> to vector<8x384xf32>
    %64 = vector.broadcast %2 : vector<8x1xf32> to vector<8x384xf32>
    %65 = arith.addf %63, %64 : vector<8x384xf32>
    %66 = vector.extract_strided_slice %62 {offsets = [8, 0], sizes = [8, 384], strides = [1, 1]} : vector<24x384xf32> to vector<8x384xf32>
    %67 = vector.broadcast %3 : vector<8x1xf32> to vector<8x384xf32>
    %68 = arith.addf %66, %67 : vector<8x384xf32>
    %69 = vector.extract_strided_slice %62 {offsets = [16, 0], sizes = [8, 384], strides = [1, 1]} : vector<24x384xf32> to vector<8x384xf32>
    %cst_15 = arith.constant dense<0.000000e+00> : vector<8xf32>
    %70 = vector.multi_reduction <add>, %69, %cst_15 [1] : vector<8x384xf32> to vector<8xf32>
    %71 = vector.shape_cast %70 : vector<8xf32> to vector<8x1xf32>
    %cst_16 = arith.constant 3.906250e-03 : f32
    %72 = vector.broadcast %cst_16 : f32 to vector<8x1xf32>
    %73 = arith.mulf %71, %72 : vector<8x1xf32>
    %74 = arith.addf %73, %4 : vector<8x1xf32>
    %75 = arith.negf %74 : vector<8x1xf32>
    %76 = math.exp %75 : vector<8x1xf32>
    %cst_17 = arith.constant 1.000000e+00 : f32
    %77 = vector.broadcast %cst_17 : f32 to vector<8x1xf32>
    %78 = arith.addf %77, %76 : vector<8x1xf32>
    %79 = arith.divf %77, %78 : vector<8x1xf32>
    %80 = vector.broadcast %79 : vector<8x1xf32> to vector<8x384xf32>
    %81 = arith.mulf %80, %68 : vector<8x384xf32>
    %82 = arith.addf %65, %81 : vector<8x384xf32>
    %83 = arith.negf %82 : vector<8x384xf32>
    %84 = math.exp %83 : vector<8x384xf32>
    %cst_18 = arith.constant 1.000000e+00 : f32
    %85 = vector.broadcast %cst_18 : f32 to vector<8x384xf32>
    %86 = arith.addf %85, %84 : vector<8x384xf32>
    %87 = arith.divf %85, %86 : vector<8x384xf32>
    %88 = arith.mulf %82, %87 : vector<8x384xf32>
    %89 = arith.truncf %88 : vector<8x384xf32> to vector<8x384xbf16>
    %c1_19 = arith.constant 1 : index
    %c0_20 = arith.constant 0 : index
    %c0_21 = arith.constant 0 : index
    %90 = vector.load %arg4[%c1_19, %c0_20, %c0_21] : memref<2x8x384xbf16, #tpu.memory_space<vmem>>, vector<1x8x384xbf16>
    %91 = vector.shape_cast %90 : vector<1x8x384xbf16> to vector<8x384xbf16>
    %92 = vector.shape_cast %89 : vector<8x384xbf16> to vector<1x8x384xbf16>
    tpu.vector_store %arg4[%c1_19, %c0_20, %c0_21], %92 {strides = array<i32>} : memref<2x8x384xbf16, #tpu.memory_space<vmem>>, vector<1x8x384xbf16>,
    return
  }
  func.func @transform_0(%arg0: i32) -> (i32, i32, i32) {
    %c0_i32 = arith.constant 0 : i32
    %c0_i32_0 = arith.constant 0 : i32
    %c0_i32_1 = arith.constant 0 : i32
    return %arg0, %c0_i32, %c0_i32_0 : i32, i32, i32
  }
  func.func @transform_1(%arg0: i32) -> (i32, i32) {
    %c0_i32 = arith.constant 0 : i32
    %c0_i32_0 = arith.constant 0 : i32
    %c0_i32_1 = arith.constant 0 : i32
    return %c0_i32, %c0_i32_0 : i32, i32
  }
  func.func @transform_2(%arg0: i32) -> (i32, i32) {
    %c0_i32 = arith.constant 0 : i32
    %c0_i32_0 = arith.constant 0 : i32
    %c0_i32_1 = arith.constant 0 : i32
    return %c0_i32, %c0_i32_0 : i32, i32
  }
  func.func @transform_3(%arg0: i32) -> (i32, i32, i32) {
    %c0_i32 = arith.constant 0 : i32
    %c0_i32_0 = arith.constant 0 : i32
    %c0_i32_1 = arith.constant 0 : i32
    return %arg0, %c0_i32, %c0_i32_0 : i32, i32, i32
  }
}

</mosaic_0001>

<llo_original>
// kernel: mcfa_forward.1
$region0: #{mcfa_forward.1}
  #allocation0 [shape = 'u32[]', space=smem, size = 0x4, offset = 0x4, fixed_abs, tag = 'smem constant byte address 0x4 - core index']
  #allocation1 [shape = 'u32[144,128]{1,0:T(1,128)}', space=vmem, size = 0x12000, scoped, tag = 'internal scratch']
  %s0 = inlined_call_operand.vmem [shape: bf16[4,4,456], index: 0, kind: input, shape index: {}]
  %s1 = inlined_call_operand.vmem [shape: bf16[24,36], index: 1, kind: input, shape index: {}]
  %s2 = inlined_call_operand.vmem [shape: f32[24,1], index: 2, kind: input, shape index: {}]
  %s3 = inlined_call_operand.vmem [shape: bf16[4,8,384], index: 3, kind: output, shape index: {}]
  %s4 = sld [smem:[#allocation0]]
  $region45: #{mcfa_forward.1} parent=0
    _
  %s6 = ssub.s32 1, %s4
  %s7 = scalar_select 0, %s6, %s4
  loop: start=0, step=1, limit=4
  $region2: #{mcfa_forward.1} parent=0 // loop_pre_header
    _
  $region3: #{mcfa_forward.1} parent=0 // loop_header
    %s9 = sphi 0, %s13
    %p10 = scmp.ge.s32.totalorder %s9, 4
    %s19 = sphi 0, %s21
    %s22 = sphi 0, %s19
    %s23 = sphi 0, %s22
    %s39 = sphi 0, %s23
    %s43 = sphi 0, %s43
    %s45 = sphi 0, %s43
    %s46 = sphi 0, %s45
    %s60 = sphi 0, %s46
    %s64 = sphi 0, %s64
    %s66 = sphi 0, %s64
    %s67 = sphi 0, %s66
    %s81 = sphi 0, %s67
    %s87 = sphi 0, %s89
    %s90 = sphi 0, %s87
    %s91 = sphi 0, %s90
    %s107 = sphi 0, %s91
  $region4: #{mcfa_forward.1} parent=0 // loop_header_branch
    %12 = sbr.rel (%p10) target = $region8
  $region5: #{mcfa_forward.1} parent=0 // loop_body
    %s14 = ssub.s32 %s9, 1
    %s15 = ssub.s32 %s9, 2
    %s16 = sadd.s32 %s9, 1
    %s17 = ssub.s32 %s9, %s16
    %p18 = scmp.eq.s32.totalorder %s17, 0
    %s20 = sadd.s32 %s19, 1
    %s21 = scalar_select %p18, %s19, %s20
    %p24 = pneg %p18
    %p25 = scmp.eq.s32.totalorder %s9, 1
    %p26 = por %p24, %p25
    %p27 = scmp.ne.s32.totalorder %s19, %s22
    %p28 = scmp.eq.s32.totalorder %s9, 0
    %p29 = por %p27, %p28
    %p30 = scmp.ne.s32.totalorder %s19, %s22
    %p31 = scmp.eq.s32.totalorder %s14, 1
    %p32 = por %p30, %p31
    %p33 = scmp.ne.s32.totalorder %s22, %s23
    %p34 = scmp.eq.s32.totalorder %s14, 0
    %p35 = por %p33, %p34
    %p36 = scmp.ne.s32.totalorder %s22, %s23
    %p37 = scmp.eq.s32.totalorder %s15, 1
    %p38 = por %p36, %p37
    %p40 = scmp.ne.s32.totalorder %s23, %s39
    %p41 = scmp.eq.s32.totalorder %s15, 0
    %p42 = por %p40, %p41
    %s44 = sadd.s32 %s43, 1
    %p47 = scmp.eq.s32.totalorder %s9, 1
    %p48 = scmp.ne.s32.totalorder %s43, %s45
    %p49 = scmp.eq.s32.totalorder %s9, 0
    %p50 = por %p48, %p49
    %p51 = scmp.ne.s32.totalorder %s43, %s45
    %p52 = scmp.eq.s32.totalorder %s14, 1
    %p53 = por %p51, %p52
    %p54 = scmp.ne.s32.totalorder %s45, %s46
    %p55 = scmp.eq.s32.totalorder %s14, 0
    %p56 = por %p54, %p55
    %p57 = scmp.ne.s32.totalorder %s45, %s46
    %p58 = scmp.eq.s32.totalorder %s15, 1
    %p59 = por %p57, %p58
    %p61 = scmp.ne.s32.totalorder %s46, %s60
    %p62 = scmp.eq.s32.totalorder %s15, 0
    %p63 = por %p61, %p62
    %s65 = sadd.s32 %s64, 1
    %p68 = scmp.eq.s32.totalorder %s9, 1
    %p69 = scmp.ne.s32.totalorder %s64, %s66
    %p70 = scmp.eq.s32.totalorder %s9, 0
    %p71 = por %p69, %p70
    %p72 = scmp.ne.s32.totalorder %s64, %s66
    %p73 = scmp.eq.s32.totalorder %s14, 1
    %p74 = por %p72, %p73
    %p75 = scmp.ne.s32.totalorder %s66, %s67
    %p76 = scmp.eq.s32.totalorder %s14, 0
    %p77 = por %p75, %p76
    %p78 = scmp.ne.s32.totalorder %s66, %s67
    %p79 = scmp.eq.s32.totalorder %s15, 1
    %p80 = por %p78, %p79
    %p82 = scmp.ne.s32.totalorder %s67, %s81
    %p83 = scmp.eq.s32.totalorder %s15, 0
    %p84 = por %p82, %p83
    %s85 = ssub.s32 %s9, %s16
    %p86 = scmp.eq.s32.totalorder %s85, 0
    %s88 = sadd.s32 %s87, 1
    %s89 = scalar_select %p86, %s87, %s88
    %p92 = pneg %p86
    %p93 = scmp.eq.s32.totalorder %s9, 1
    %p94 = por %p92, %p93
    %p95 = scmp.ne.s32.totalorder %s87, %s90
    %p96 = scmp.eq.s32.totalorder %s9, 0
    %p97 = por %p95, %p96
    %p98 = scmp.ne.s32.totalorder %s87, %s90
    %p99 = scmp.eq.s32.totalorder %s14, 1
    %p100 = por %p98, %p99
    %p101 = scmp.ne.s32.totalorder %s90, %s91
    %p102 = scmp.eq.s32.totalorder %s14, 0
    %p103 = por %p101, %p102
    %p104 = scmp.ne.s32.totalorder %s90, %s91
    %p105 = scmp.eq.s32.totalorder %s15, 1
    %p106 = por %p104, %p105
    %p108 = scmp.ne.s32.totalorder %s91, %s107
    %p109 = scmp.eq.s32.totalorder %s15, 0
    %p110 = por %p108, %p109
    %p111 = scmp.le.s32.totalorder 1, %s9
    %p112 = scmp.lt.s32.totalorder %s9, 3
    %p113 = pnand %p111, %p112
    %p114 = pneg %p113
    // Predicated region
    $region9: #{mcfa_forward.1} parent=5 // pred_check
      _
    $region10: #{mcfa_forward.1} parent=5 // pred_check_branch
      %116 = sbr.rel (%p113) target = $region12
    $region11: #{mcfa_forward.1} parent=5 // pred_region
      %s117 = ssub.s32 %s9, 1
      // Predicated region
      $region13: #{mcfa_forward.1} parent=11 // pred_check
        %p118 = pneg %p56
      $region14: #{mcfa_forward.1} parent=11 // pred_check_branch
        %120 = sbr.rel (%p118) target = $region16
      $region15: #{mcfa_forward.1} parent=11 // pred_region
        _
      $region16: #{mcfa_forward.1} parent=11 // pred_fallthru
        _
      // Predicated region
      $region17: #{mcfa_forward.1} parent=11 // pred_check
        %p121 = pneg %p77
      $region18: #{mcfa_forward.1} parent=11 // pred_check_branch
        %123 = sbr.rel (%p121) target = $region20
      $region19: #{mcfa_forward.1} parent=11 // pred_region
        _
      $region20: #{mcfa_forward.1} parent=11 // pred_fallthru
        _
    $region12: #{mcfa_forward.1} parent=5 // pred_fallthru
      _
    %p124 = scmp.lt.s32.totalorder %s9, 2
    // Predicated region
    $region21: #{mcfa_forward.1} parent=5 // pred_check
      %p125 = pneg %p124
    $region22: #{mcfa_forward.1} parent=5 // pred_check_branch
      %127 = sbr.rel (%p125) target = $region24
    $region23: #{mcfa_forward.1} parent=5 // pred_region
      // Predicated region
      $region25: #{mcfa_forward.1} parent=23 // pred_check
        %p128 = pneg %p29
      $region26: #{mcfa_forward.1} parent=23 // pred_check_branch
        %130 = sbr.rel (%p128) target = $region28
      $region27: #{mcfa_forward.1} parent=23 // pred_region
        %s131 = smul.u32 2, %s9
        %p132 = scmp.lt.s32.totalorder %s131, 3
        %s133 = scalar_select %p132, %s131, 3
        %s134 = smul.addr %s133, 4
        %s135 = smul.addr %s134, 2
        %s136 = scalar_lea.vmem %s0, %s135
        %s137 = smul.u32 2, %s9
      $region28: #{mcfa_forward.1} parent=23 // pred_fallthru
        _
    $region24: #{mcfa_forward.1} parent=5 // pred_fallthru
      _
    %p138 = scmp.le.s32.totalorder 1, %s9
    %p139 = scmp.lt.s32.totalorder %s9, 3
    %p140 = pnand %p138, %p139
    %p141 = pneg %p140
    // Predicated region
    $region29: #{mcfa_forward.1} parent=5 // pred_check
      _
    $region30: #{mcfa_forward.1} parent=5 // pred_check_branch
      %143 = sbr.rel (%p140) target = $region32
    $region31: #{mcfa_forward.1} parent=5 // pred_region
      %s144 = ssub.s32 %s9, 1
      %s145 = smul.u32 2, %s14
      %p146 = scmp.lt.s32.totalorder %s145, 3
      %s147 = scalar_select %p146, %s145, 3
      %s148 = smul.addr %s147, 4
      %s149 = smul.addr %s148, 2
      %s150 = scalar_lea.vmem %s0, %s149
      %p151 = pneg %p35
      %p152 = pneg %p32
      %p153 = pneg %p56
      %p154 = pneg %p53
      %p155 = pneg %p77
      %p156 = pneg %p74
      %p157 = pneg %p103
      %p158 = pneg %p100
      %s159 = smul.u32 2, %s14
      %p160 = scmp.lt.s32.totalorder %s159, 3
      %s161 = scalar_select %p160, %s159, 3
      %s162 = smul.addr %s161, 3
      %s163 = smul.addr %s162, 4
      %s164 = scalar_lea.vmem %s3, %s163
      %s165 = smul.u32 2, %s14
      %p166 = scmp.lt.s32.totalorder %s165, 3
      %s167 = scalar_select %p166, %s165, 3
      %s168 = smul.addr %s167, 4
      %s169 = smul.addr %s168, 2
      %s170 = scalar_lea.vmem %s0, %s169
      %s171 = smul.u32 2, %s14
      %s172 = smul.u32 2, %s14
      %p173 = scmp.lt.s32.totalorder %s172, 3
      %s174 = scalar_select %p173, %s172, 3
      %s175 = smul.addr %s174, 3
      %s176 = smul.addr %s175, 4
      %s177 = scalar_lea.vmem %s3, %s176
      %s178 = smul.u32 2, %s14
      %v180 = vld [vmem:[%s1] sm:$0xf]
      %v181 = vld [vmem:[%s1 + $0x4] sm:$0xf]
      %v182 = vld [vmem:[%s1 + $0x8] sm:$0xf]
      %v183 = vld [vmem:[%s2] sm:$0xff]
      %v184 = vld [vmem:[%s2 + $0x8] sm:$0xff]
      %v185 = vld [vmem:[%s2 + $0x10] sm:$0xff]
      %v186 = vld [vmem:[%s170] sm:$0xff]
      %v188 = vcombine.high %v186, %v186
      %v190 = vunpack.c.l.s4 1983009808
      %v191 = vunpack.c.0.s8 %v190
      %v192 = vlaneseq
      %v193 = vshrl.u32 %v192, 7
      %v194 = vsub.s32 %v191, %v193
      %v195 = vrot.slane %v186, %v194
      %v197 = vunpack.c.l.s4 1983009808
      %v198 = vunpack.c.0.s8 %v197
      %v199 = vlaneseq
      %v200 = vshrl.u32 %v199, 7
      %v201 = vsub.s32 %v198, %v200
      %v202 = vrot.slane %v188, %v201
      %v203 = vcombine.high %v195, %v195
      %v204 = vcombine.low %v186, %v186
      %v206 = vunpack.c.l.s4 1983009808
      %v207 = vunpack.c.0.s8 %v206
      %v208 = vlaneseq
      %v209 = vshrl.u32 %v208, 7
      %v210 = vsub.s32 %v207, %v209
      %v211 = vrot.slane %v204, %v210
      %v212 = vcombine.high %v211, %v211
      %213 = vrot.lane.b32.xlu0 %v211, 127
      %v214 = vpop.permute.xlu0 %213
      %215 = vrot.lane.b32.xlu0 %v212, 127
      %v216 = vpop.permute.xlu0 %215
      %217 = vrot.lane.b32.xlu0 %v195, 127
      %v218 = vpop.permute.xlu0 %217
      %219 = vrot.lane.b32.xlu0 %v203, 127
      %v220 = vpop.permute.xlu0 %219
      %vm221 = vcmask 1039360
      %v222 = vsel %vm221, %v214, %v216
      %v223 = vsel %vm221, %v216, %v218
      %v224 = vsel %vm221, %v218, %v220
      %v225 = vcombine.low %v195, %v195
      %v226 = vcombine.low %v202, %v202
      %227 = vrot.lane.b32.xlu0 %v225, 126
      %v228 = vpop.permute.xlu0 %227
      %229 = vrot.lane.b32.xlu0 %v195, 126
      %v230 = vpop.permute.xlu0 %229
      %231 = vrot.lane.b32.xlu0 %v226, 126
      %v232 = vpop.permute.xlu0 %231
      %233 = vrot.lane.b32.xlu0 %v202, 126
      %v234 = vpop.permute.xlu0 %233
      %vm235 = vcmask 1031168
      %v236 = vsel %vm235, %v228, %v230
      %v237 = vsel %vm235, %v230, %v232
      %v238 = vsel %vm235, %v232, %v234
      %v239 = vcombine.low %v211, %v211
      %240 = vrot.lane.b32.xlu0 %v239, 104
      %v241 = vpop.permute.xlu0 %240
      %242 = vrot.lane.b32.xlu0 %v211, 104
      %v243 = vpop.permute.xlu0 %242
      %244 = vrot.lane.b32.xlu0 %v225, 104
      %v245 = vpop.permute.xlu0 %244
      %246 = vrot.lane.b32.xlu0 %v195, 104
      %v247 = vpop.permute.xlu0 %246
      %vm248 = vcmask 850944
      %v249 = vsel %vm248, %v241, %v243
      %v250 = vsel %vm248, %v243, %v245
      %v251 = vsel %vm248, %v245, %v247
      %v252 = vcombine.high %v202, %v202
      %253 = vrot.lane.b32.xlu0 %v195, 103
      %v254 = vpop.permute.xlu0 %253
      %255 = vrot.lane.b32.xlu0 %v203, 103
      %v256 = vpop.permute.xlu0 %255
      %257 = vrot.lane.b32.xlu0 %v202, 103
      %v258 = vpop.permute.xlu0 %257
      %259 = vrot.lane.b32.xlu0 %v252, 103
      %v260 = vpop.permute.xlu0 %259
      %vm261 = vcmask 842752
      %v262 = vsel %vm261, %v254, %v256
      %v263 = vsel %vm261, %v256, %v258
      %v264 = vsel %vm261, %v258, %v260
      %265 = vrot.lane.b32.xlu0 %v211, 102
      %v266 = vpop.permute.xlu0 %265
      %267 = vrot.lane.b32.xlu0 %v212, 102
      %v268 = vpop.permute.xlu0 %267
      %269 = vrot.lane.b32.xlu0 %v195, 102
      %v270 = vpop.permute.xlu0 %269
      %271 = vrot.lane.b32.xlu0 %v203, 102
      %v272 = vpop.permute.xlu0 %271
      %vm273 = vcmask 834560
      %v274 = vsel %vm273, %v266, %v268
      %v275 = vsel %vm273, %v268, %v270
      %v276 = vsel %vm273, %v270, %v272
      %277 = vrot.lane.b32.xlu0 %v225, 80
      %v278 = vpop.permute.xlu0 %277
      %279 = vrot.lane.b32.xlu0 %v195, 80
      %v280 = vpop.permute.xlu0 %279
      %281 = vrot.lane.b32.xlu0 %v226, 80
      %v282 = vpop.permute.xlu0 %281
      %283 = vrot.lane.b32.xlu0 %v202, 80
      %v284 = vpop.permute.xlu0 %283
      %vm285 = vcmask 654336
      %v286 = vsel %vm285, %v278, %v280
      %v287 = vsel %vm285, %v280, %v282
      %v288 = vsel %vm285, %v282, %v284
      %289 = vrot.lane.b32.xlu0 %v239, 79
      %v290 = vpop.permute.xlu0 %289
      %291 = vrot.lane.b32.xlu0 %v211, 79
      %v292 = vpop.permute.xlu0 %291
      %293 = vrot.lane.b32.xlu0 %v225, 79
      %v294 = vpop.permute.xlu0 %293
      %295 = vrot.lane.b32.xlu0 %v195, 79
      %v296 = vpop.permute.xlu0 %295
      %vm297 = vcmask 646144
      %v298 = vsel %vm297, %v290, %v292
      %v299 = vsel %vm297, %v292, %v294
      %v300 = vsel %vm297, %v294, %v296
      %301 = vrot.lane.b32.xlu0 %v195, 78
      %v302 = vpop.permute.xlu0 %301
      %303 = vrot.lane.b32.xlu0 %v203, 78
      %v304 = vpop.permute.xlu0 %303
      %305 = vrot.lane.b32.xlu0 %v202, 78
      %v306 = vpop.permute.xlu0 %305
      %307 = vrot.lane.b32.xlu0 %v252, 78
      %v308 = vpop.permute.xlu0 %307
      %vm309 = vcmask 637952
      %v310 = vsel %vm309, %v302, %v304
      %v311 = vsel %vm309, %v304, %v306
      %v312 = vsel %vm309, %v306, %v308
      %vm313 = vcmask 1041408
      %v316 = vsel %vm313, %v195, %v222
      %v319 = vsel %vm313, %v203, %v223
      %v322 = vsel %vm313, %v202, %v224
      %vm323 = vcmask 1043456
      %v325 = vsel %vm323, %v316, %v236
      %v327 = vsel %vm323, %v319, %v237
      %v329 = vsel %vm323, %v322, %v238
      %vm330 = vcmask 1045504
      %v332 = vsel %vm330, %v325, %v249
      %v335 = vsel %vm330, %v327, %v250
      %v338 = vsel %vm330, %v329, %v251
      %v342 = vsel %vm313, %v262, %v274
      %v345 = vsel %vm313, %v263, %v275
      %v348 = vsel %vm313, %v264, %v276
      %v350 = vsel %vm323, %v342, %v286
      %v352 = vsel %vm323, %v345, %v287
      %v354 = vsel %vm323, %v348, %v288
      %v356 = vsel %vm330, %v350, %v298
      %v359 = vsel %vm330, %v352, %v299
      %v362 = vsel %vm330, %v354, %v300
      %s364 = scalar_lea.vmem %s170, 8
      %v365 = vld [vmem:[%s364] sm:$0xff]
      %v367 = vcombine.high %v365, %v365
      %v369 = vunpack.c.l.s4 1983009808
      %v370 = vunpack.c.0.s8 %v369
      %v371 = vlaneseq
      %v372 = vshrl.u32 %v371, 7
      %v373 = vsub.s32 %v370, %v372
      %v374 = vrot.slane %v365, %v373
      %v376 = vunpack.c.l.s4 1983009808
      %v377 = vunpack.c.0.s8 %v376
      %v378 = vlaneseq
      %v379 = vshrl.u32 %v378, 7
      %v380 = vsub.s32 %v377, %v379
      %v381 = vrot.slane %v367, %v380
      %v382 = vcombine.high %v374, %v374
      %v383 = vcombine.low %v365, %v365
      %v385 = vunpack.c.l.s4 1983009808
      %v386 = vunpack.c.0.s8 %v385
      %v387 = vlaneseq
      %v388 = vshrl.u32 %v387, 7
      %v389 = vsub.s32 %v386, %v388
      %v390 = vrot.slane %v383, %v389
      %v391 = vcombine.high %v390, %v390
      %392 = vrot.lane.b32.xlu0 %v390, 127
      %v393 = vpop.permute.xlu0 %392
      %394 = vrot.lane.b32.xlu0 %v391, 127
      %v395 = vpop.permute.xlu0 %394
      %396 = vrot.lane.b32.xlu0 %v374, 127
      %v397 = vpop.permute.xlu0 %396
      %398 = vrot.lane.b32.xlu0 %v382, 127
      %v399 = vpop.permute.xlu0 %398
      %v400 = vsel %vm221, %v393, %v395
      %v401 = vsel %vm221, %v395, %v397
      %v402 = vsel %vm221, %v397, %v399
      %v403 = vcombine.low %v374, %v374
      %v404 = vcombine.low %v381, %v381
      %405 = vrot.lane.b32.xlu0 %v403, 126
      %v406 = vpop.permute.xlu0 %405
      %407 = vrot.lane.b32.xlu0 %v374, 126
      %v408 = vpop.permute.xlu0 %407
      %409 = vrot.lane.b32.xlu0 %v404, 126
      %v410 = vpop.permute.xlu0 %409
      %411 = vrot.lane.b32.xlu0 %v381, 126
      %v412 = vpop.permute.xlu0 %411
      %v413 = vsel %vm235, %v406, %v408
      %v414 = vsel %vm235, %v408, %v410
      %v415 = vsel %vm235, %v410, %v412
      %v416 = vcombine.low %v390, %v390
      %417 = vrot.lane.b32.xlu0 %v416, 104
      %v418 = vpop.permute.xlu0 %417
      %419 = vrot.lane.b32.xlu0 %v390, 104
      %v420 = vpop.permute.xlu0 %419
      %421 = vrot.lane.b32.xlu0 %v403, 104
      %v422 = vpop.permute.xlu0 %421
      %423 = vrot.lane.b32.xlu0 %v374, 104
      %v424 = vpop.permute.xlu0 %423
      %v425 = vsel %vm248, %v418, %v420
      %v426 = vsel %vm248, %v420, %v422
      %v427 = vsel %vm248, %v422, %v424
      %v428 = vcombine.high %v381, %v381
      %429 = vrot.lane.b32.xlu0 %v374, 103
      %v430 = vpop.permute.xlu0 %429
      %431 = vrot.lane.b32.xlu0 %v382, 103
      %v432 = vpop.permute.xlu0 %431
      %433 = vrot.lane.b32.xlu0 %v381, 103
      %v434 = vpop.permute.xlu0 %433
      %435 = vrot.lane.b32.xlu0 %v428, 103
      %v436 = vpop.permute.xlu0 %435
      %v437 = vsel %vm261, %v430, %v432
      %v438 = vsel %vm261, %v432, %v434
      %v439 = vsel %vm261, %v434, %v436
      %440 = vrot.lane.b32.xlu0 %v390, 102
      %v441 = vpop.permute.xlu0 %440
      %442 = vrot.lane.b32.xlu0 %v391, 102
      %v443 = vpop.permute.xlu0 %442
      %444 = vrot.lane.b32.xlu0 %v374, 102
      %v445 = vpop.permute.xlu0 %444
      %446 = vrot.lane.b32.xlu0 %v382, 102
      %v447 = vpop.permute.xlu0 %446
      %v448 = vsel %vm273, %v441, %v443
      %v449 = vsel %vm273, %v443, %v445
      %v450 = vsel %vm273, %v445, %v447
      %451 = vrot.lane.b32.xlu0 %v403, 80
      %v452 = vpop.permute.xlu0 %451
      %453 = vrot.lane.b32.xlu0 %v374, 80
      %v454 = vpop.permute.xlu0 %453
      %455 = vrot.lane.b32.xlu0 %v404, 80
      %v456 = vpop.permute.xlu0 %455
      %457 = vrot.lane.b32.xlu0 %v381, 80
      %v458 = vpop.permute.xlu0 %457
      %v459 = vsel %vm285, %v452, %v454
      %v460 = vsel %vm285, %v454, %v456
      %v461 = vsel %vm285, %v456, %v458
      %462 = vrot.lane.b32.xlu0 %v416, 79
      %v463 = vpop.permute.xlu0 %462
      %464 = vrot.lane.b32.xlu0 %v390, 79
      %v465 = vpop.permute.xlu0 %464
      %466 = vrot.lane.b32.xlu0 %v403, 79
      %v467 = vpop.permute.xlu0 %466
      %468 = vrot.lane.b32.xlu0 %v374, 79
      %v469 = vpop.permute.xlu0 %468
      %v470 = vsel %vm297, %v463, %v465
      %v471 = vsel %vm297, %v465, %v467
      %v472 = vsel %vm297, %v467, %v469
      %473 = vrot.lane.b32.xlu0 %v374, 78
      %v474 = vpop.permute.xlu0 %473
      %475 = vrot.lane.b32.xlu0 %v382, 78
      %v476 = vpop.permute.xlu0 %475
      %477 = vrot.lane.b32.xlu0 %v381, 78
      %v478 = vpop.permute.xlu0 %477
      %479 = vrot.lane.b32.xlu0 %v428, 78
      %v480 = vpop.permute.xlu0 %479
      %v481 = vsel %vm309, %v474, %v476
      %v482 = vsel %vm309, %v476, %v478
      %v483 = vsel %vm309, %v478, %v480
      %v486 = vsel %vm313, %v374, %v400
      %v489 = vsel %vm313, %v382, %v401
      %v492 = vsel %vm313, %v381, %v402
      %v494 = vsel %vm323, %v486, %v413
      %v496 = vsel %vm323, %v489, %v414
      %v498 = vsel %vm323, %v492, %v415
      %v500 = vsel %vm330, %v494, %v425
      %v503 = vsel %vm330, %v496, %v426
      %v506 = vsel %vm330, %v498, %v427
      %v510 = vsel %vm313, %v437, %v448
      %v513 = vsel %vm313, %v438, %v449
      %v516 = vsel %vm313, %v439, %v450
      %v518 = vsel %vm323, %v510, %v459
      %v520 = vsel %vm323, %v513, %v460
      %v522 = vsel %vm323, %v516, %v461
      %v524 = vsel %vm330, %v518, %v470
      %v527 = vsel %vm330, %v520, %v471
      %v530 = vsel %vm330, %v522, %v472
      %v535 = vunpack.c.l.b16 %v180
      %v536 = vunpack.c.l.b16 %v181
      %v537 = vunpack.c.l.b16 %v182
      %v538 = vpack.c.b16 %v536, %v535
      %v539 = vpack.c.b16 %v537, %v537
      %vm540 = vcmask 293888
      %v542 = vsel %vm540, %v538, 0
      %v545 = vsel %vm540, %v539, 0
      %v548 = vsel %vm313, %v310, 0
      %v551 = vsel %vm313, %v311, 0
      %v554 = vsel %vm313, %v312, 0
      %v557 = vsel %vm313, %v481, 0
      %v560 = vsel %vm313, %v482, 0
      %v563 = vsel %vm313, %v483, 0
      %565 = vmatprep.subr.bf16.mxu0 %v335
      %566 = vmatpush1.bf16.msra.mxu0 %v332
      %567 = vmatprep.subr.bf16.mxu0 %v359
      %568 = vmatpush1.bf16.msra.mxu0 %v356
      %569 = vmatprep.subr.bf16.mxu0 %v551
      %570 = vmatpush1.bf16.msra.mxu0 %v548
      %571 = vmatprep.subr.bf16.mxu0 0
      %572 = vmatpush1.bf16.msra.mxu0 0
      %573 = vmatprep.subr.bf16.mxu0 0
      %574 = vmatpush1.bf16.msra.mxu0 0
      %575 = vmatprep.subr.bf16.mxu0 0
      %576 = vmatpush1.bf16.msra.mxu0 0
      %577 = vmatprep.subr.bf16.mxu0 0
      %578 = vmatpush1.bf16.msra.mxu0 0
      %579 = vmatprep.subr.bf16.mxu0 0
      %580 = vmatpush1.bf16.msra.mxu0 0
      %581 = vmatprep.subr.bf16.mxu0 0
      %582 = vmatpush1.bf16.msra.mxu0 0
      %583 = vmatprep.subr.bf16.mxu0 0
      %584 = vmatpush1.bf16.msra.mxu0 0
      %585 = vmatprep.subr.bf16.mxu0 0
      %586 = vmatpush1.bf16.msra.mxu0 0
      %587 = vmatprep.subr.bf16.mxu0 0
      %588 = vmatpush1.bf16.msra.mxu0 0
      %589 = vmatprep.subr.bf16.mxu0 0
      %590 = vmatpush1.bf16.msra.mxu0 0
      %591 = vmatprep.subr.bf16.mxu0 0
      %592 = vmatpush1.bf16.msra.mxu0 0
      %593 = vmatprep.subr.bf16.mxu0 0
      %594 = vmatpush1.bf16.msra.mxu0 0
      %595 = vmatprep.subr.bf16.mxu0 0
      %596 = vmatpush1.bf16.msra.mxu0 0
      %597 = vmatprep.mubr.bf16.mxu0 0
      %598 = vmatmul.mubr.bf16.gmra.mrb[0].mxu0 %v542
      %v599 = vpop.f32.mrb[0].mxu0
      %v600 = vadd.f32 0.0, %v599
      %v601 = vpop.f32.mrb[0].mxu0
      %v602 = vadd.f32 0.0, %v601
      %v603 = vpop.f32.mrb[0].mxu0
      %v604 = vadd.f32 0.0, %v603
      %v605 = vpop.f32.mrb[0].mxu0
      %v606 = vadd.f32 0.0, %v605
      %607 = vmatprep.mubr.bf16.mxu0 0
      %608 = vmatmul.mubr.bf16.gmra.mrb[0].mxu0 %v545
      %v609 = vpop.f32.mrb[0].mxu0
      %v610 = vadd.f32 0.0, %v609
      %v611 = vpop.f32.mrb[0].mxu0
      %v612 = vadd.f32 0.0, %v611
      %v613 = vpop.f32.mrb[0].mxu0
      %v614 = vpop.f32.mrb[0].mxu0
      %615 = vdwg.mxu0
      %616 = vmatprep.subr.bf16.mxu0 %v500
      %617 = vmatpush1.bf16.msra.mxu0 %v338
      %618 = vmatprep.subr.bf16.mxu0 %v524
      %619 = vmatpush1.bf16.msra.mxu0 %v362
      %620 = vmatprep.subr.bf16.mxu0 %v557
      %621 = vmatpush1.bf16.msra.mxu0 %v554
      %622 = vmatprep.subr.bf16.mxu0 0
      %623 = vmatpush1.bf16.msra.mxu0 0
      %624 = vmatprep.subr.bf16.mxu0 0
      %625 = vmatpush1.bf16.msra.mxu0 0
      %626 = vmatprep.subr.bf16.mxu0 0
      %627 = vmatpush1.bf16.msra.mxu0 0
      %628 = vmatprep.subr.bf16.mxu0 0
      %629 = vmatpush1.bf16.msra.mxu0 0
      %630 = vmatprep.subr.bf16.mxu0 0
      %631 = vmatpush1.bf16.msra.mxu0 0
      %632 = vmatprep.subr.bf16.mxu0 0
      %633 = vmatpush1.bf16.msra.mxu0 0
      %634 = vmatprep.subr.bf16.mxu0 0
      %635 = vmatpush1.bf16.msra.mxu0 0
      %636 = vmatprep.subr.bf16.mxu0 0
      %637 = vmatpush1.bf16.msra.mxu0 0
      %638 = vmatprep.subr.bf16.mxu0 0
      %639 = vmatpush1.bf16.msra.mxu0 0
      %640 = vmatprep.subr.bf16.mxu0 0
      %641 = vmatpush1.bf16.msra.mxu0 0
      %642 = vmatprep.subr.bf16.mxu0 0
      %643 = vmatpush1.bf16.msra.mxu0 0
      %644 = vmatprep.subr.bf16.mxu0 0
      %645 = vmatpush1.bf16.msra.mxu0 0
      %646 = vmatprep.subr.bf16.mxu0 0
      %647 = vmatpush1.bf16.msra.mxu0 0
      %648 = vmatprep.mubr.bf16.mxu0 0
      %649 = vmatmul.mubr.bf16.gmra.mrb[0].mxu0 %v542
      %v650 = vpop.f32.mrb[0].mxu0
      %v651 = vadd.f32 0.0, %v650
      %v652 = vpop.f32.mrb[0].mxu0
      %v653 = vadd.f32 0.0, %v652
      %v654 = vpop.f32.mrb[0].mxu0
      %v655 = vadd.f32 0.0, %v654
      %v656 = vpop.f32.mrb[0].mxu0
      %v657 = vadd.f32 0.0, %v656
      %658 = vmatprep.mubr.bf16.mxu0 0
      %659 = vmatmul.mubr.bf16.gmra.mrb[0].mxu0 %v545
      %v660 = vpop.f32.mrb[0].mxu0
      %v661 = vadd.f32 0.0, %v660
      %v662 = vpop.f32.mrb[0].mxu0
      %v663 = vadd.f32 0.0, %v662
      %v664 = vpop.f32.mrb[0].mxu0
      %v665 = vpop.f32.mrb[0].mxu0
      %666 = vdwg.mxu0
      %667 = vmatprep.subr.bf16.mxu0 %v506
      %668 = vmatpush1.bf16.msra.mxu0 %v503
      %669 = vmatprep.subr.bf16.mxu0 %v530
      %670 = vmatpush1.bf16.msra.mxu0 %v527
      %671 = vmatprep.subr.bf16.mxu0 %v563
      %672 = vmatpush1.bf16.msra.mxu0 %v560
      %673 = vmatprep.subr.bf16.mxu0 0
      %674 = vmatpush1.bf16.msra.mxu0 0
      %675 = vmatprep.subr.bf16.mxu0 0
      %676 = vmatpush1.bf16.msra.mxu0 0
      %677 = vmatprep.subr.bf16.mxu0 0
      %678 = vmatpush1.bf16.msra.mxu0 0
      %679 = vmatprep.subr.bf16.mxu0 0
      %680 = vmatpush1.bf16.msra.mxu0 0
      %681 = vmatprep.subr.bf16.mxu0 0
      %682 = vmatpush1.bf16.msra.mxu0 0
      %683 = vmatprep.subr.bf16.mxu0 0
      %684 = vmatpush1.bf16.msra.mxu0 0
      %685 = vmatprep.subr.bf16.mxu0 0
      %686 = vmatpush1.bf16.msra.mxu0 0
      %687 = vmatprep.subr.bf16.mxu0 0
      %688 = vmatpush1.bf16.msra.mxu0 0
      %689 = vmatprep.subr.bf16.mxu0 0
      %690 = vmatpush1.bf16.msra.mxu0 0
      %691 = vmatprep.subr.bf16.mxu0 0
      %692 = vmatpush1.bf16.msra.mxu0 0
      %693 = vmatprep.subr.bf16.mxu0 0
      %694 = vmatpush1.bf16.msra.mxu0 0
      %695 = vmatprep.subr.bf16.mxu0 0
      %696 = vmatpush1.bf16.msra.mxu0 0
      %697 = vmatprep.subr.bf16.mxu0 0
      %698 = vmatpush1.bf16.msra.mxu0 0
      %699 = vmatprep.mubr.bf16.mxu0 0
      %700 = vmatmul.mubr.bf16.gmra.mrb[0].mxu0 %v542
      %v701 = vpop.f32.mrb[0].mxu0
      %v702 = vadd.f32 0.0, %v701
      %v703 = vpop.f32.mrb[0].mxu0
      %v704 = vadd.f32 0.0, %v703
      %v705 = vpop.f32.mrb[0].mxu0
      %v706 = vadd.f32 0.0, %v705
      %v707 = vpop.f32.mrb[0].mxu0
      %v708 = vadd.f32 0.0, %v707
      %709 = vmatprep.mubr.bf16.mxu0 0
      %710 = vmatmul.mubr.bf16.gmra.mrb[0].mxu0 %v545
      %v711 = vpop.f32.mrb[0].mxu0
      %v712 = vadd.f32 0.0, %v711
      %v713 = vpop.f32.mrb[0].mxu0
      %v714 = vadd.f32 0.0, %v713
      %v715 = vpop.f32.mrb[0].mxu0
      %v716 = vpop.f32.mrb[0].mxu0
      %717 = vdwg.mxu0
      %719 = vset.pattern.permute.xlu0 0
      %720 = vperm.xlu0 %719, %v183
      %v721 = vpop.permute.xlu0 %720
      %v723 = vadd.f32 %v600, %v721
      %v724 = vadd.f32 %v602, %v721
      %v725 = vadd.f32 %v651, %v721
      %727 = vset.pattern.permute.xlu0 0
      %728 = vperm.xlu0 %727, %v184
      %v729 = vpop.permute.xlu0 %728
      %v731 = vadd.f32 %v604, %v729
      %v732 = vadd.f32 %v606, %v729
      %v733 = vadd.f32 %v655, %v729
      %v734 = vadd.f32 %v610, %v612
      %v735 = vadd.f32 %v734, %v661
      %736 = vadd.xlane.f32.xlu0 %v735
      %v737 = vpop.xlane.xlu0 %736
      %v738 = vmul.f32 %v737, 0.00390625
      %v739 = vadd.f32 %v738, %v185
      %v740 = vxor.u32 %v739, 2147483648
      %v741 = vmul.f32 %v740, 1.442695
      %v742 = vpow.pop %v741
      %v743 = vadd.f32 %v742, 1.0
      %v744 = vrcp.pop %v743
      %v745 = vmul.f32 1.0, %v744
      %747 = vset.pattern.permute.xlu0 0
      %748 = vperm.xlu0 %747, %v745
      %v749 = vpop.permute.xlu0 %748
      %v751 = vmul.f32 %v749, %v731
      %v752 = vmul.f32 %v749, %v732
      %v753 = vmul.f32 %v749, %v733
      %v754 = vadd.f32 %v723, %v751
      %v755 = vadd.f32 %v724, %v752
      %v756 = vadd.f32 %v725, %v753
      %v757 = vxor.u32 %v754, 2147483648
      %v758 = vxor.u32 %v755, 2147483648
      %v759 = vxor.u32 %v756, 2147483648
      %v760 = vmul.f32 %v757, 1.442695
      %v761 = vpow.pop %v760
      %v762 = vmul.f32 %v758, 1.442695
      %v763 = vpow.pop %v762
      %v764 = vmul.f32 %v759, 1.442695
      %v765 = vpow.pop %v764
      %v766 = vadd.f32 %v761, 1.0
      %v767 = vadd.f32 %v763, 1.0
      %v768 = vadd.f32 %v765, 1.0
      %v769 = vrcp.pop %v766
      %v770 = vmul.f32 1.0, %v769
      %v771 = vrcp.pop %v767
      %v772 = vmul.f32 1.0, %v771
      %v773 = vrcp.pop %v768
      %v774 = vmul.f32 1.0, %v773
      %v775 = vmul.f32 %v754, %v770
      %v776 = vmul.f32 %v755, %v772
      %v777 = vmul.f32 %v756, %v774
      %v778 = vpack.c.bf16 %v775, %v775
      %v779 = vpack.c.bf16 %v776, %v776
      %v780 = vpack.c.bf16 %v777, %v777
      %v784 = vunpack.c.l.b16 %v778
      %v785 = vunpack.c.l.b16 %v779
      %v786 = vunpack.c.l.b16 %v780
      %v787 = vpack.c.b16 %v785, %v784
      %v788 = vpack.c.b16 %v786, %v786
      %791 = vst [vmem:[%s177] sm:$0xff] %v787
      %792 = vst [vmem:[%s177 + $0x8] sm:$0xf] %v788
      %v793 = vadd.f32 %v653, %v721
      %v794 = vadd.f32 %v702, %v721
      %v795 = vadd.f32 %v704, %v721
      %v796 = vadd.f32 %v657, %v729
      %v797 = vadd.f32 %v706, %v729
      %v798 = vadd.f32 %v708, %v729
      %v799 = vadd.f32 %v663, %v712
      %v800 = vadd.f32 %v799, %v714
      %801 = vadd.xlane.f32.xlu0 %v800
      %v802 = vpop.xlane.xlu0 %801
      %v803 = vmul.f32 %v802, 0.00390625
      %v804 = vadd.f32 %v803, %v185
      %v805 = vxor.u32 %v804, 2147483648
      %v806 = vmul.f32 %v805, 1.442695
      %v807 = vpow.pop %v806
      %v808 = vadd.f32 %v807, 1.0
      %v809 = vrcp.pop %v808
      %v810 = vmul.f32 1.0, %v809
      %812 = vset.pattern.permute.xlu0 0
      %813 = vperm.xlu0 %812, %v810
      %v814 = vpop.permute.xlu0 %813
      %v816 = vmul.f32 %v814, %v796
      %v817 = vmul.f32 %v814, %v797
      %v818 = vmul.f32 %v814, %v798
      %v819 = vadd.f32 %v793, %v816
      %v820 = vadd.f32 %v794, %v817
      %v821 = vadd.f32 %v795, %v818
      %v822 = vxor.u32 %v819, 2147483648
      %v823 = vxor.u32 %v820, 2147483648
      %v824 = vxor.u32 %v821, 2147483648
      %v825 = vmul.f32 %v822, 1.442695
      %v826 = vpow.pop %v825
      %v827 = vmul.f32 %v823, 1.442695
      %v828 = vpow.pop %v827
      %v829 = vmul.f32 %v824, 1.442695
      %v830 = vpow.pop %v829
      %v831 = vadd.f32 %v826, 1.0
      %v832 = vadd.f32 %v828, 1.0
      %v833 = vadd.f32 %v830, 1.0
      %v834 = vrcp.pop %v831
      %v835 = vmul.f32 1.0, %v834
      %v836 = vrcp.pop %v832
      %v837 = vmul.f32 1.0, %v836
      %v838 = vrcp.pop %v833
      %v839 = vmul.f32 1.0, %v838
      %v840 = vmul.f32 %v819, %v835
      %v841 = vmul.f32 %v820, %v837
      %v842 = vmul.f32 %v821, %v839
      %v843 = vpack.c.bf16 %v840, %v840
      %v844 = vpack.c.bf16 %v841, %v841
      %v845 = vpack.c.bf16 %v842, %v842
      %v849 = vunpack.c.l.b16 %v843
      %v850 = vunpack.c.l.b16 %v844
      %v851 = vunpack.c.l.b16 %v845
      %v852 = vpack.c.b16 %v850, %v849
      %v853 = vpack.c.b16 %v851, %v851
      %s856 = scalar_lea.vmem %s177, 12
      %857 = vst [vmem:[%s856] sm:$0xff] %v852
      %858 = vst [vmem:[%s856 + $0x8] sm:$0xf] %v853
      %s859 = smul.u32 2, %s14
      %p860 = scmp.lt.s32.totalorder %s859, 3
      %s861 = scalar_select %p860, %s859, 3
      %s862 = smul.addr %s861, 3
      %s863 = smul.addr %s862, 4
      %s864 = scalar_lea.vmem %s3, %s863
      // Predicated region
      $region33: #{mcfa_forward.1} parent=31 // pred_check
        %p865 = pneg %p100
      $region34: #{mcfa_forward.1} parent=31 // pred_check_branch
        %867 = sbr.rel (%p865) target = $region36
      $region35: #{mcfa_forward.1} parent=31 // pred_region
        %s868 = smul.u32 2, %s14
      $region36: #{mcfa_forward.1} parent=31 // pred_fallthru
        _
    $region32: #{mcfa_forward.1} parent=5 // pred_fallthru
      _
    %p869 = scmp.le.s32.totalorder 2, %s9
    // Predicated region
    $region37: #{mcfa_forward.1} parent=5 // pred_check
      %p870 = pneg %p869
    $region38: #{mcfa_forward.1} parent=5 // pred_check_branch
      %872 = sbr.rel (%p870) target = $region40
    $region39: #{mcfa_forward.1} parent=5 // pred_region
      %s873 = ssub.s32 %s9, 2
      // Predicated region
      $region41: #{mcfa_forward.1} parent=39 // pred_check
        %p874 = pneg %p106
      $region42: #{mcfa_forward.1} parent=39 // pred_check_branch
        %876 = sbr.rel (%p874) target = $region44
      $region43: #{mcfa_forward.1} parent=39 // pred_region
        %s877 = smul.u32 2, %s15
        %p878 = scmp.lt.s32.totalorder %s877, 3
        %s879 = scalar_select %p878, %s877, 3
        %s880 = smul.addr %s879, 3
        %s881 = smul.addr %s880, 4
        %s882 = scalar_lea.vmem %s3, %s881
      $region44: #{mcfa_forward.1} parent=39 // pred_fallthru
        _
    $region40: #{mcfa_forward.1} parent=5 // pred_fallthru
      _
  $region6: #{mcfa_forward.1} parent=0 // loop_footer
    %s13 = sadd.s32 1, %s9
  $region7: #{mcfa_forward.1} parent=0 // loop_footer_branch
    %8 = sbr.rel target = $region3
  $region8: #{mcfa_forward.1} parent=0 // loop_exit
    _

</llo_original>
